<compile_context>
chip_gen: v5e
topology: v5e:2x2
jax: 0.10.0
libtpu: 0.0.40
codegen_flags: <defaults>
</compile_context>

<pallas_src>
import functools

import jax
import jax.numpy as jnp
from jax import lax
from jax.experimental import pallas as pl
from jax.experimental.pallas import tpu as pltpu

HIDDEN = 50        # hidden width from the nn.Module (Linear(input_size, 50))
HIDDEN_PAD = 128   # lane-aligned padded hidden width (zero rows/cols -> exact on MXU)
LANE = 128


def _round_up(a, m):
    return -(-a // m) * m


def net_kernel(x_ref, w1_ref, b1_ref, w2_ref, b2_ref, o_ref, *, out_num):
    # x arrives f32 straight from HBM; cast to bf16 in-kernel.
    x_bf = x_ref[...].astype(jnp.bfloat16)

    # Linear(input_size, 50): bf16 MXU operands, f32 accumulation.
    h = jnp.dot(x_bf, w1_ref[...], preferred_element_type=jnp.float32)
    h = jnp.maximum(h + b1_ref[...], 0.0)          # bias + ReLU in f32 (VPU)

    # Linear(50, output_num): bf16 MXU operands, f32 accumulation.
    logits = jnp.dot(h.astype(jnp.bfloat16), w2_ref[...],
                     preferred_element_type=jnp.float32)
    logits = logits + b2_ref[...]

    # Padded logit lanes must not contribute to the softmax row sum.
    lane = lax.broadcasted_iota(jnp.int32, logits.shape, 1)
    logits = jnp.where(lane < out_num, logits, -1e30)

    # Numerically stable softmax over dim 1; reciprocal on the EUP slot (~free).
    m = jnp.max(logits, axis=1, keepdims=True)
    e = jnp.exp(logits - m)
    denom = jnp.sum(e, axis=1, keepdims=True)
    probs = e * pl.reciprocal(denom, approx=True)

    # bf16, lane-dense store halves the dominant HBM writeback traffic.
    o_ref[...] = probs.astype(o_ref.dtype)


def prepare_params(w1, b1, w2, b2):
    """One-time parameter prep (hoisted out of the per-call forward):
    zero-pad hidden/output dims to 128 lanes and pre-cast matmul operands to bf16.

    w1: (input_size, 50)  b1: (1, 50) or (50,)
    w2: (50, out_num)     b2: (1, out_num) or (out_num,)
    """
    input_size, hidden = w1.shape
    assert hidden == HIDDEN
    hidden2, out_num = w2.shape
    assert hidden2 == hidden
    out_pad = max(LANE, _round_up(out_num, LANE))

    w1p = jnp.zeros((input_size, HIDDEN_PAD), jnp.float32).at[:, :hidden].set(w1)
    b1p = jnp.zeros((1, HIDDEN_PAD), jnp.float32).at[:, :hidden].set(
        jnp.reshape(b1, (1, hidden)))
    w2p = jnp.zeros((HIDDEN_PAD, out_pad), jnp.float32).at[:hidden, :out_num].set(w2)
    b2p = jnp.zeros((1, out_pad), jnp.float32).at[:, :out_num].set(
        jnp.reshape(b2, (1, out_num)))

    return dict(
        w1=w1p.astype(jnp.bfloat16),   # (input_size, 128) bf16
        b1=b1p,                        # (1, 128) f32
        w2=w2p.astype(jnp.bfloat16),   # (128, out_pad) bf16
        b2=b2p,                        # (1, out_pad) f32
        out_num=out_num,
        out_pad=out_pad,
        input_size=input_size,
    )


def _choose_tb(B, input_size, out_pad, tb_desired):
    """Batch tile: as large as a ~16 MiB tile budget allows (safe under v7x's
    32 MiB scoped VMEM even for big input_size), multiple of 16 (bf16 sublane
    packing), and split so large batches cover >=2 grid steps (v7x megacore)."""
    # double-buffered f32 x tile + double-buffered bf16 out tile + f32 intermediates
    per_row = 2 * input_size * 4 + 2 * out_pad * 2 + 6 * out_pad * 4
    budget = 16 * 1024 * 1024
    tb = min(int(tb_desired), max(16, budget // per_row))
    tb = max(16, (tb // 16) * 16)
    if B <= tb:
        if B >= 32:
            # Whole batch fits in one tile: split into two balanced tiles so the
            # "parallel" batch axis actually lands on both v7x TensorCores.
            tb = _round_up(_round_up(B, 2) // 2, 16)
        else:
            tb = B  # full-extent block (always a legal block shape)
    return tb


def net_forward(x, params, *, tb=1024, compact=True):
    """Fused Linear->ReLU->Linear->softmax forward.

    x: (B, input_size) f32. params: output of prepare_params().
    Returns (B, output_num) f32 probabilities (squeezed to (B,) when
    output_num == 1), or the raw lane-padded (B, out_pad) bf16 buffer when
    compact=False (lets a downstream consumer skip the compaction pass).
    """
    B, input_size = x.shape
    assert input_size == params["input_size"]
    out_num, out_pad = params["out_num"], params["out_pad"]

    tb = _choose_tb(B, input_size, out_pad, tb)
    grid = (pl.cdiv(B, tb),)   # ragged last block: Pallas clips OOB writes

    out = pl.pallas_call(
        functools.partial(net_kernel, out_num=out_num),
        out_shape=jax.ShapeDtypeStruct((B, out_pad), jnp.bfloat16),
        grid_spec=pltpu.PrefetchScalarGridSpec(
            num_scalar_prefetch=0,
            grid=grid,
            in_specs=[
                pl.BlockSpec((tb, input_size), lambda i: (i, 0)),          # x (pipelined)
                pl.BlockSpec((input_size, HIDDEN_PAD), lambda i: (0, 0)),  # w1 resident
                pl.BlockSpec((1, HIDDEN_PAD), lambda i: (0, 0)),           # b1 resident
                pl.BlockSpec((HIDDEN_PAD, out_pad), lambda i: (0, 0)),     # w2 resident
                pl.BlockSpec((1, out_pad), lambda i: (0, 0)),              # b2 resident
            ],
            out_specs=pl.BlockSpec((tb, out_pad), lambda i: (i, 0)),       # lane-dense
        ),
        compiler_params=pltpu.CompilerParams(
            dimension_semantics=("parallel",),     # megacore split on v7x
            vmem_limit_bytes=32 * 1024 * 1024,     # tiles budgeted to ~16 MiB
        ),
    )(x, params["w1"], params["b1"], params["w2"], params["b2"])

    if not compact:
        return out                                  # (B, out_pad) bf16
    out = out[:, :out_num].astype(jnp.float32)
    if out_num == 1:                                # PyTorch's x.squeeze(-1)
        out = jnp.squeeze(out, axis=-1)
    return out


def init_params(key, input_size, output_num, hidden=HIDDEN):
    """Matches the module's __init__: weights ~ N(0, 0.1); biases keep PyTorch's
    Linear default U(-1/sqrt(fan_in), 1/sqrt(fan_in))."""
    k1, k2, k3, k4 = jax.random.split(key, 4)
    w1 = 0.1 * jax.random.normal(k1, (input_size, hidden), dtype=jnp.float32)
    b1_bound = 1.0 / jnp.sqrt(jnp.float32(input_size))
    b1 = jax.random.uniform(k2, (1, hidden), minval=-b1_bound, maxval=b1_bound,
                            dtype=jnp.float32)
    w2 = 0.1 * jax.random.normal(k3, (hidden, output_num), dtype=jnp.float32)
    b2_bound = 1.0 / jnp.sqrt(jnp.float32(hidden))
    b2 = jax.random.uniform(k4, (1, output_num), minval=-b2_bound, maxval=b2_bound,
                            dtype=jnp.float32)
    return w1, b1, w2, b2


def net_forward_ref(x, w1, b1, w2, b2):
    """Pure-JAX f32 reference of the PyTorch forward."""
    h = jnp.maximum(x @ w1 + b1, 0.0)
    logits = h @ w2 + b2
    p = jax.nn.softmax(logits, axis=1)
    if p.shape[-1] == 1:
        p = jnp.squeeze(p, axis=-1)
    return p


if __name__ == "__main__":
    key = jax.random.PRNGKey(0)
    kx, kp = jax.random.split(key)

    B, input_size, output_num = 8, 32, 4
    x = jax.random.normal(kx, (B, input_size), dtype=jnp.float32)
    w1, b1, w2, b2 = init_params(kp, input_size, output_num)

    params = prepare_params(w1, b1, w2, b2)   # one-time pad + bf16 cast
    out = net_forward(x, params)
    jax.block_until_ready(out)

    # Sanity: shape, softmax rows sum to ~1, and agreement with the f32 reference
    # (bf16 matmul inputs + bf16 output store + approx reciprocal -> loose tolerance).
    assert out.shape == (B, output_num)
    row_sums = jnp.sum(out, axis=1)
    assert bool(jnp.allclose(row_sums, 1.0, atol=1e-2))
    ref = net_forward_ref(x, w1, b1, w2, b2)
    assert bool(jnp.allclose(out, ref, atol=2.5e-2))

    print("KERNEL_OK")
</pallas_src>

<mosaic_0001>
module attributes {stable_mosaic.version = 11 : i64} {
  func.func @net_kernel(%arg0: i32, %arg1: memref<8x32xf32, #tpu.memory_space<vmem>>, %arg2: memref<32x128xbf16, #tpu.memory_space<vmem>>, %arg3: memref<1x128xf32, #tpu.memory_space<vmem>>, %arg4: memref<128x128xbf16, #tpu.memory_space<vmem>>, %arg5: memref<1x128xf32, #tpu.memory_space<vmem>>, %arg6: memref<8x128xbf16, #tpu.memory_space<vmem>>) attributes {dimension_semantics = [#tpu.dimension_semantics<parallel>], iteration_bounds = array<i64: 1>, scalar_prefetch = 0 : i64, scratch_operands = 0 : i64, tpu.core_type = #tpu.core_type<tc>, window_params = [{transform_indices = @transform_0, window_bounds = array<i64: 8, 32>}, {pipeline_mode = #tpu.pipeline_mode<synchronous>, transform_indices = @transform_1, window_bounds = array<i64: 32, 128>}, {pipeline_mode = #tpu.pipeline_mode<synchronous>, transform_indices = @transform_2, window_bounds = array<i64: 1, 128>}, {pipeline_mode = #tpu.pipeline_mode<synchronous>, transform_indices = @transform_3, window_bounds = array<i64: 128, 128>}, {pipeline_mode = #tpu.pipeline_mode<synchronous>, transform_indices = @transform_4, window_bounds = array<i64: 1, 128>}, {transform_indices = @transform_5, window_bounds = array<i64: 8, 128>}]} {
    %c0 = arith.constant 0 : index
    %c0_0 = arith.constant 0 : index
    %0 = vector.load %arg1[%c0, %c0_0] : memref<8x32xf32, #tpu.memory_space<vmem>>, vector<8x32xf32>
    %1 = arith.truncf %0 : vector<8x32xf32> to vector<8x32xbf16>
    %c0_1 = arith.constant 0 : index
    %c0_2 = arith.constant 0 : index
    %2 = vector.load %arg2[%c0_1, %c0_2] : memref<32x128xbf16, #tpu.memory_space<vmem>>, vector<32x128xbf16>
    %cst = arith.constant dense<0.000000e+00> : vector<8x128xf32>
    %3 = tpu.matmul %1, %2, %cst {dimension_numbers = #tpu.dot_dimension_numbers<[1], [0], [0], [1], [0, 0, 1, 1], [], []>} : vector<8x32xbf16>, vector<32x128xbf16>, vector<8x128xf32> -> vector<8x128xf32>
    %c0_3 = arith.constant 0 : index
    %c0_4 = arith.constant 0 : index
    %4 = vector.load %arg3[%c0_3, %c0_4] : memref<1x128xf32, #tpu.memory_space<vmem>>, vector<1x128xf32>
    %5 = vector.broadcast %4 : vector<1x128xf32> to vector<8x128xf32>
    %6 = arith.addf %3, %5 : vector<8x128xf32>
    %cst_5 = arith.constant 0.000000e+00 : f32
    %7 = vector.broadcast %cst_5 : f32 to vector<8x128xf32>
    %8 = arith.maximumf %6, %7 : vector<8x128xf32>
    %9 = arith.truncf %8 : vector<8x128xf32> to vector<8x128xbf16>
    %c0_6 = arith.constant 0 : index
    %c0_7 = arith.constant 0 : index
    %10 = vector.load %arg4[%c0_6, %c0_7] : memref<128x128xbf16, #tpu.memory_space<vmem>>, vector<128x128xbf16>
    %cst_8 = arith.constant dense<0.000000e+00> : vector<8x128xf32>
    %11 = tpu.matmul %9, %10, %cst_8 {dimension_numbers = #tpu.dot_dimension_numbers<[1], [0], [0], [1], [0, 0, 1, 1], [], []>} : vector<8x128xbf16>, vector<128x128xbf16>, vector<8x128xf32> -> vector<8x128xf32>
    %c0_9 = arith.constant 0 : index
    %c0_10 = arith.constant 0 : index
    %12 = vector.load %arg5[%c0_9, %c0_10] : memref<1x128xf32, #tpu.memory_space<vmem>>, vector<1x128xf32>
    %13 = vector.broadcast %12 : vector<1x128xf32> to vector<8x128xf32>
    %14 = arith.addf %11, %13 : vector<8x128xf32>
    %15 = tpu.iota {dimensions = array<i32: 1>} : vector<8x128xi32>
    %c4_i32 = arith.constant 4 : i32
    %16 = vector.broadcast %c4_i32 : i32 to vector<8x128xi32>
    %17 = arith.cmpi slt, %15, %16 : vector<8x128xi32>
    %cst_11 = arith.constant -1.000000e+30 : f32
    %18 = vector.broadcast %cst_11 : f32 to vector<8x128xf32>
    %19 = arith.select %17, %14, %18 : vector<8x128xi1>, vector<8x128xf32>
    %cst_12 = arith.constant dense<0xFF800000> : vector<8xf32>
    %20 = vector.multi_reduction <maximumf>, %19, %cst_12 [1] : vector<8x128xf32> to vector<8xf32>
    %21 = vector.shape_cast %20 : vector<8xf32> to vector<8x1xf32>
    %22 = vector.broadcast %21 : vector<8x1xf32> to vector<8x128xf32>
    %23 = arith.subf %19, %22 : vector<8x128xf32>
    %24 = math.exp %23 : vector<8x128xf32>
    %cst_13 = arith.constant dense<0.000000e+00> : vector<8xf32>
    %25 = vector.multi_reduction <add>, %24, %cst_13 [1] : vector<8x128xf32> to vector<8xf32>
    %26 = vector.shape_cast %25 : vector<8xf32> to vector<8x1xf32>
    %27 = tpu.reciprocal %26 {approx = true} : vector<8x1xf32> -> vector<8x1xf32>
    %28 = vector.broadcast %27 : vector<8x1xf32> to vector<8x128xf32>
    %29 = arith.mulf %24, %28 : vector<8x128xf32>
    %30 = arith.truncf %29 : vector<8x128xf32> to vector<8x128xbf16>
    %c0_14 = arith.constant 0 : index
    %c0_15 = arith.constant 0 : index
    %31 = vector.load %arg6[%c0_14, %c0_15] : memref<8x128xbf16, #tpu.memory_space<vmem>>, vector<8x128xbf16>
    tpu.vector_store %arg6[%c0_14, %c0_15], %30 {strides = array<i32>} : memref<8x128xbf16, #tpu.memory_space<vmem>>, vector<8x128xbf16>,
    return
  }
  func.func @transform_0(%arg0: i32) -> (i32, i32) {
    %c0_i32 = arith.constant 0 : i32
    %c0_i32_0 = arith.constant 0 : i32
    return %arg0, %c0_i32 : i32, i32
  }
  func.func @transform_1(%arg0: i32) -> (i32, i32) {
    %c0_i32 = arith.constant 0 : i32
    %c0_i32_0 = arith.constant 0 : i32
    %c0_i32_1 = arith.constant 0 : i32
    return %c0_i32, %c0_i32_0 : i32, i32
  }
  func.func @transform_2(%arg0: i32) -> (i32, i32) {
    %c0_i32 = arith.constant 0 : i32
    %c0_i32_0 = arith.constant 0 : i32
    %c0_i32_1 = arith.constant 0 : i32
    return %c0_i32, %c0_i32_0 : i32, i32
  }
  func.func @transform_3(%arg0: i32) -> (i32, i32) {
    %c0_i32 = arith.constant 0 : i32
    %c0_i32_0 = arith.constant 0 : i32
    %c0_i32_1 = arith.constant 0 : i32
    return %c0_i32, %c0_i32_0 : i32, i32
  }
  func.func @transform_4(%arg0: i32) -> (i32, i32) {
    %c0_i32 = arith.constant 0 : i32
    %c0_i32_0 = arith.constant 0 : i32
    %c0_i32_1 = arith.constant 0 : i32
    return %c0_i32, %c0_i32_0 : i32, i32
  }
  func.func @transform_5(%arg0: i32) -> (i32, i32) {
    %c0_i32 = arith.constant 0 : i32
    %c0_i32_0 = arith.constant 0 : i32
    return %arg0, %c0_i32 : i32, i32
  }
}

</mosaic_0001>

<llo_original>
// kernel: tpu_custom_call.1
$region0: #{tpu_custom_call.1}
  #allocation0 [shape = 'u32[]', space=smem, size = 0x4, offset = 0x4, fixed_abs, tag = 'smem constant byte address 0x4 - core index']
  #allocation1 [shape = 'u32[72,128]{1,0:T(1,128)}', space=vmem, size = 0x9000, scoped, tag = 'internal scratch']
  %s0 = inlined_call_operand.hbm [shape: f32[8,32], index: 0, kind: input, shape index: {}]
  %s1 = inlined_call_operand.hbm [shape: bf16[32,128], index: 1, kind: input, shape index: {}]
  %s2 = inlined_call_operand.vmem [shape: f32[1,128], index: 2, kind: input, shape index: {}]
  %s3 = inlined_call_operand.hbm [shape: bf16[128,128], index: 3, kind: input, shape index: {}]
  %s4 = inlined_call_operand.vmem [shape: f32[1,128], index: 4, kind: input, shape index: {}]
  %s5 = inlined_call_operand.hbm [shape: bf16[8,128], index: 5, kind: output, shape index: {}]
  %s6 = sld [smem:[#allocation0]]
  $region42: #{tpu_custom_call.1} parent=0
    _
  %s8 = ssub.s32 1, %s6
  %s9 = scalar_select 0, %s8, %s6
  $region1: #{tpu_custom_call.1} parent=0
    #allocation2 [shape = 'u8[4096]{0}', space=vmem, size = 0x1000, scoped, tag = 'input window, operand 0, single buffered']
    #allocation3 [shape = 's32[1]{0}', space=sflag, size = 0x4, scoped, tag = 'scoped memory for tpu_custom_call.1']
    #allocation4 [shape = 's32[1]{0}', space=sflag, size = 0x4, scoped, tag = 'scoped memory for tpu_custom_call.1']
    #allocation5 [shape = 'u8[8192]{0}', space=vmem, size = 0x2000, scoped, tag = 'input window, operand 1, single buffered']
    #allocation6 [shape = 's32[1]{0}', space=sflag, size = 0x4, scoped, tag = 'scoped memory for tpu_custom_call.1']
    #allocation7 [shape = 'u8[32768]{0}', space=vmem, size = 0x8000, scoped, tag = 'input window, operand 3, single buffered']
    #allocation8 [shape = 'u8[2048]{0}', space=vmem, size = 0x800, scoped, tag = 'output window, operand 0, single buffered']
    %10 = vsyncpa [#allocation3], 0
    %11 = vsyncpa [#allocation6], 0
    %12 = vsyncpa [#allocation4], 0
    // Predicated region
    $region2: #{tpu_custom_call.1} parent=1 // pred_check
      _
    $region3: #{tpu_custom_call.1} parent=1 // pred_check_branch
      %14 = sbr.rel (0) target = $region5
    $region4: #{tpu_custom_call.1} parent=1 // pred_region
      %16 = vsyncadd [#allocation3], 0
      %s18 = sshll.u32 %s0, 4
      %s19 = int_to_ptr.hbm [resolvable:$true] %s18
      %s20 = sshll.u32 [#allocation2], 4
      %s21 = int_to_ptr.vmem [resolvable:$true] %s20
      %23 = dma.hbm_to_vmem [thread:$0]  %s19, 128, %s21, [#allocation3]
    $region5: #{tpu_custom_call.1} parent=1 // pred_fallthru
      _
    // Predicated region
    $region6: #{tpu_custom_call.1} parent=1 // pred_check
      _
    $region7: #{tpu_custom_call.1} parent=1 // pred_check_branch
      %25 = sbr.rel (0) target = $region9
    $region8: #{tpu_custom_call.1} parent=1 // pred_region
      %27 = vsyncadd [#allocation6], 0
      %s28 = sshll.u32 %s1, 4
      %s29 = int_to_ptr.hbm [resolvable:$true] %s28
      %s30 = sshll.u32 [#allocation5], 4
      %s31 = int_to_ptr.vmem [resolvable:$true] %s30
      %36 = dma.hbm_to_vmem [thread:$0]  %s29, 256, %s31, [#allocation6], 64, 64, 4
    $region9: #{tpu_custom_call.1} parent=1 // pred_fallthru
      _
    // Predicated region
    $region10: #{tpu_custom_call.1} parent=1 // pred_check
      _
    $region11: #{tpu_custom_call.1} parent=1 // pred_check_branch
      %38 = sbr.rel (0) target = $region13
    $region12: #{tpu_custom_call.1} parent=1 // pred_region
      _
    $region13: #{tpu_custom_call.1} parent=1 // pred_fallthru
      _
    // Predicated region
    $region14: #{tpu_custom_call.1} parent=1 // pred_check
      _
    $region15: #{tpu_custom_call.1} parent=1 // pred_check_branch
      %40 = sbr.rel (0) target = $region17
    $region16: #{tpu_custom_call.1} parent=1 // pred_region
      %42 = vsyncadd [#allocation6], 0
      %s43 = sshll.u32 %s3, 4
      %s44 = int_to_ptr.hbm [resolvable:$true] %s43
      %s45 = sshll.u32 [#allocation7], 4
      %s46 = int_to_ptr.vmem [resolvable:$true] %s45
      %51 = dma.hbm_to_vmem [thread:$0]  %s44, 1024, %s46, [#allocation6], 64, 64, 4
    $region17: #{tpu_custom_call.1} parent=1 // pred_fallthru
      _
    // Predicated region
    $region18: #{tpu_custom_call.1} parent=1 // pred_check
      _
    $region19: #{tpu_custom_call.1} parent=1 // pred_check_branch
      %53 = sbr.rel (0) target = $region21
    $region20: #{tpu_custom_call.1} parent=1 // pred_region
      _
    $region21: #{tpu_custom_call.1} parent=1 // pred_fallthru
      _
    // Predicated region
    $region22: #{tpu_custom_call.1} parent=1 // pred_check
      _
    $region23: #{tpu_custom_call.1} parent=1 // pred_check_branch
      %55 = sbr.rel (0) target = $region25
    $region24: #{tpu_custom_call.1} parent=1 // pred_region
      %57 = dma.done [#allocation3], 128
    $region25: #{tpu_custom_call.1} parent=1 // pred_fallthru
      _
    // Predicated region
    $region26: #{tpu_custom_call.1} parent=1 // pred_check
      _
    $region27: #{tpu_custom_call.1} parent=1 // pred_check_branch
      %59 = sbr.rel (0) target = $region29
    $region28: #{tpu_custom_call.1} parent=1 // pred_region
      %61 = dma.done [#allocation6], 256
    $region29: #{tpu_custom_call.1} parent=1 // pred_fallthru
      _
    // Predicated region
    $region30: #{tpu_custom_call.1} parent=1 // pred_check
      _
    $region31: #{tpu_custom_call.1} parent=1 // pred_check_branch
      %63 = sbr.rel (0) target = $region33
    $region32: #{tpu_custom_call.1} parent=1 // pred_region
      %65 = dma.done [#allocation6], 1024
    $region33: #{tpu_custom_call.1} parent=1 // pred_fallthru
      _
    %v67 = vld [vmem:[#allocation2] sm:$0xff]
    %v68 = vpack.c.bf16 %v67, %v67
    %v69 = vld [vmem:[#allocation5] sm:$0xf]
    %v70 = vld [vmem:[#allocation5 + $0x4] sm:$0xf]
    %v71 = vld [vmem:[#allocation5 + $0x8] sm:$0xf]
    %v72 = vld [vmem:[#allocation5 + $0xc] sm:$0xf]
    %v73 = vld [vmem:[%s2] sm:$0x1]
    %v75 = vperm.slane %v73, 0
    %v81 = vunpack.c.l.b16 %v69
    %v82 = vunpack.c.l.b16 %v70
    %v83 = vunpack.c.l.b16 %v71
    %v84 = vunpack.c.l.b16 %v72
    %v85 = vpack.c.b16 %v82, %v81
    %v86 = vpack.c.b16 %v84, %v83
    %vm89 = vcmask 261120
    %v91 = vsel %vm89, %v68, 0
    %93 = vmatpush.bf16.msra.mxu0 0
    %94 = vmatpush.bf16.msra.mxu0 0
    %95 = vmatpush.bf16.msra.mxu0 0
    %96 = vmatpush.bf16.msra.mxu0 0
    %97 = vmatpush.bf16.msra.mxu0 0
    %98 = vmatpush.bf16.msra.mxu0 0
    %99 = vmatpush.bf16.msra.mxu0 %v86
    %100 = vmatpush.bf16.msra.mxu0 %v85
    %101 = vmatmul.bf16.gmra.mxu0 %v91
    %v102 = vpop.f32.mrf.mxu0
    %v103 = vadd.f32 %v75, %v102
    %v104 = vpop.f32.mrf.mxu0
    %105 = vdwg.mxu0
    %v106 = vmax.f32 %v103, 0.0
    %v107 = vpack.c.bf16 %v106, %v106
    %v108 = vld [vmem:[#allocation7] sm:$0xf]
    %v109 = vld [vmem:[#allocation7 + $0x4] sm:$0xf]
    %v110 = vld [vmem:[#allocation7 + $0x8] sm:$0xf]
    %v111 = vld [vmem:[#allocation7 + $0xc] sm:$0xf]
    %v112 = vld [vmem:[#allocation7 + $0x10] sm:$0xf]
    %v113 = vld [vmem:[#allocation7 + $0x14] sm:$0xf]
    %v114 = vld [vmem:[#allocation7 + $0x18] sm:$0xf]
    %v115 = vld [vmem:[#allocation7 + $0x1c] sm:$0xf]
    %v116 = vld [vmem:[#allocation7 + $0x20] sm:$0xf]
    %v117 = vld [vmem:[#allocation7 + $0x24] sm:$0xf]
    %v118 = vld [vmem:[#allocation7 + $0x28] sm:$0xf]
    %v119 = vld [vmem:[#allocation7 + $0x2c] sm:$0xf]
    %v120 = vld [vmem:[#allocation7 + $0x30] sm:$0xf]
    %v121 = vld [vmem:[#allocation7 + $0x34] sm:$0xf]
    %v122 = vld [vmem:[#allocation7 + $0x38] sm:$0xf]
    %v123 = vld [vmem:[#allocation7 + $0x3c] sm:$0xf]
    %v124 = vld [vmem:[%s4] sm:$0x1]
    %v126 = vperm.slane %v124, 0
    %v144 = vunpack.c.l.b16 %v108
    %v145 = vunpack.c.l.b16 %v109
    %v146 = vunpack.c.l.b16 %v110
    %v147 = vunpack.c.l.b16 %v111
    %v148 = vunpack.c.l.b16 %v112
    %v149 = vunpack.c.l.b16 %v113
    %v150 = vunpack.c.l.b16 %v114
    %v151 = vunpack.c.l.b16 %v115
    %v152 = vunpack.c.l.b16 %v116
    %v153 = vunpack.c.l.b16 %v117
    %v154 = vunpack.c.l.b16 %v118
    %v155 = vunpack.c.l.b16 %v119
    %v156 = vunpack.c.l.b16 %v120
    %v157 = vunpack.c.l.b16 %v121
    %v158 = vunpack.c.l.b16 %v122
    %v159 = vunpack.c.l.b16 %v123
    %v160 = vpack.c.b16 %v145, %v144
    %v161 = vpack.c.b16 %v147, %v146
    %v162 = vpack.c.b16 %v149, %v148
    %v163 = vpack.c.b16 %v151, %v150
    %v164 = vpack.c.b16 %v153, %v152
    %v165 = vpack.c.b16 %v155, %v154
    %v166 = vpack.c.b16 %v157, %v156
    %v167 = vpack.c.b16 %v159, %v158
    %176 = vmatpush.bf16.msra.mxu0 %v167
    %177 = vmatpush.bf16.msra.mxu0 %v166
    %178 = vmatpush.bf16.msra.mxu0 %v165
    %179 = vmatpush.bf16.msra.mxu0 %v164
    %180 = vmatpush.bf16.msra.mxu0 %v163
    %181 = vmatpush.bf16.msra.mxu0 %v162
    %182 = vmatpush.bf16.msra.mxu0 %v161
    %183 = vmatpush.bf16.msra.mxu0 %v160
    %184 = vmatmul.bf16.gmra.mxu0 %v107
    %v185 = vpop.f32.mrf.mxu0
    %v186 = vadd.f32 %v126, %v185
    %v187 = vpop.f32.mrf.mxu0
    %188 = vdwg.mxu0
    %v189 = vlaneseq
    %v190 = vand.u32 %v189, 127
    %vm191 = vcmp.lt.s32.totalorder %v190, 4
    %v192 = vsel %vm191, %v186, -1e+30
    %193 = vmax.xlane.f32.xlu0 %v192
    %v194 = vpop.xlane.xlu0 %193
    %v195 = vsub.f32 %v192, %v194
    %v196 = vmul.f32 %v195, 1.442695
    %v197 = vpow.pop %v196
    %198 = vadd.xlane.f32.xlu0 %v197
    %v199 = vpop.xlane.xlu0 %198
    %v200 = vrcp.pop %v199
    %v201 = vmul.f32 %v197, %v200
    %v202 = vpack.c.bf16 %v201, %v201
    %203 = vst [vmem:[#allocation8] sm:$0xf] %v202
    // Predicated region
    $region34: #{tpu_custom_call.1} parent=1 // pred_check
      _
    $region35: #{tpu_custom_call.1} parent=1 // pred_check_branch
      %205 = sbr.rel (0) target = $region37
    $region36: #{tpu_custom_call.1} parent=1 // pred_region
      %207 = vsyncadd [#allocation4], 0
      %s209 = sshll.u32 [#allocation8], 4
      %s210 = int_to_ptr.vmem [resolvable:$true] %s209
      %s211 = sshll.u32 %s5, 4
      %s212 = int_to_ptr.hbm [resolvable:$true] %s211
      %214 = dma.vmem_to_hbm [thread:$0]  %s210, 64, %s212, [#allocation4]
    $region37: #{tpu_custom_call.1} parent=1 // pred_fallthru
      _
    // Predicated region
    $region38: #{tpu_custom_call.1} parent=1 // pred_check
      _
    $region39: #{tpu_custom_call.1} parent=1 // pred_check_branch
      %216 = sbr.rel (0) target = $region41
    $region40: #{tpu_custom_call.1} parent=1 // pred_region
      %218 = dma.done [#allocation4], 64
    $region41: #{tpu_custom_call.1} parent=1 // pred_fallthru
      _
    %219 = vsyncpa [#allocation3], 1
    %220 = vsyncpa [#allocation6], 1
    %221 = vsyncpa [#allocation4], 1

</llo_original>
